<compile_context>
chip_gen: v5e
topology: v5e:2x2
jax: 0.10.0
libtpu: 0.0.40
codegen_flags: <defaults>
</compile_context>

<pallas_src>
import functools

import numpy as np
import jax
import jax.numpy as jnp
from jax import lax
from jax.experimental import pallas as pl
from jax.experimental.pallas import tpu as pltpu

_VMEM_LIMIT = 32 * 1024 * 1024  # explicit scoped-VMEM budget (safe on v5e/v6e/v7x)


# ---------------------------------------------------------------------------
# Kernel 1: matmul + folded BatchNorm (scale/shift) + optional ReLU
#   used for: 1x1 conv + BN1 + ReLU
# ---------------------------------------------------------------------------
def _matmul_bn_kernel(x_ref, w_ref, s_ref, b_ref, o_ref, *, relu):
    y = jnp.dot(x_ref[...], w_ref[...], preferred_element_type=jnp.float32)
    y = y * s_ref[...] + b_ref[...]            # f32 epilogue (v5e-safe)
    if relu:
        y = jnp.maximum(y, 0.0)
    o_ref[...] = y.astype(o_ref.dtype)


def matmul_bn(x, w, scale, shift, *, relu, out_dtype=jnp.float32, tile_m=512):
    M, K = x.shape
    N = w.shape[1]
    tm = min(tile_m, M)
    if tm < M and tm % 8:                      # second-to-last block dim: mult of 8 or full
        tm = M
    grid = (pl.cdiv(M, tm),)                   # partial tail block handled by masked stores
    return pl.pallas_call(
        functools.partial(_matmul_bn_kernel, relu=relu),
        out_shape=jax.ShapeDtypeStruct((M, N), out_dtype),
        grid=grid,
        in_specs=[
            pl.BlockSpec((tm, K), lambda i: (i, 0)),
            pl.BlockSpec((K, N), lambda i: (0, 0)),
            pl.BlockSpec((1, N), lambda i: (0, 0)),
            pl.BlockSpec((1, N), lambda i: (0, 0)),
        ],
        out_specs=pl.BlockSpec((tm, N), lambda i: (i, 0)),
        compiler_params=pltpu.CompilerParams(
            dimension_semantics=("parallel",),
            vmem_limit_bytes=_VMEM_LIMIT),
    )(x, w, scale.reshape(1, N), shift.reshape(1, N))


# ---------------------------------------------------------------------------
# Kernel 2: 3x3 conv (in-kernel 9-tap accumulation over a halo'd block) + BN2,
#           fused with Gram-Schmidt compression + excitation MLP (per-batch gate).
#   pre[b, hw, c]  = BN2( sum_{dy,dx} y1_pad[b, hw+off(dy,dx), :] @ W2[dy,dx] )
#   comp[b, c]     = sum_hw filtT[hw, c] * pre[b, hw, c]
#   gate[b, c]     = sigmoid( relu(comp @ We1) @ We2 )
# ---------------------------------------------------------------------------
def _conv3x3_bn_ortho_kernel(y_ref, w2_ref, s2_ref, b2_ref, filt_ref,
                             we1_ref, we2_ref, pre_ref, gate_ref, *, H, W, Cp):
    acc = jnp.zeros((H * W, Cp), jnp.float32)
    t = 0
    for dy in range(3):
        for dx in range(3):
            win = y_ref[0, dy:dy + H, dx:dx + W, :].reshape(H * W, Cp)
            acc = acc + jnp.dot(win, w2_ref[t * Cp:(t + 1) * Cp, :],
                                preferred_element_type=jnp.float32)
            t += 1
    pre = acc * s2_ref[...] + b2_ref[...]                       # f32, (HW, Cp)
    pre_ref[0] = pre.astype(pre_ref.dtype)

    comp = jnp.sum(pre * filt_ref[...], axis=0, keepdims=True)  # (1, Cp)
    h = jnp.maximum(jnp.dot(comp, we1_ref[...],
                            preferred_element_type=jnp.float32), 0.0)
    gate_ref[0] = jax.nn.sigmoid(
        jnp.dot(h, we2_ref[...], preferred_element_type=jnp.float32))


def conv3x3_bn_ortho(y_pad, w2, s2, b2, filt_t, we1, we2, *, H, W):
    # TODO(synk): for very large H*W, add a row-tiled grid axis with halo DMA.
    B = y_pad.shape[0]
    Cp = w2.shape[1]
    hid = we1.shape[1]
    HW = H * W
    kernel = functools.partial(_conv3x3_bn_ortho_kernel, H=H, W=W, Cp=Cp)
    return pl.pallas_call(
        kernel,
        out_shape=(jax.ShapeDtypeStruct((B, HW, Cp), jnp.bfloat16),
                   jax.ShapeDtypeStruct((B, 1, Cp), jnp.float32)),
        grid=(B,),
        in_specs=[
            pl.BlockSpec((1, H + 2, W + 2, Cp), lambda b: (b, 0, 0, 0)),
            pl.BlockSpec((9 * Cp, Cp), lambda b: (0, 0)),
            pl.BlockSpec((1, Cp), lambda b: (0, 0)),
            pl.BlockSpec((1, Cp), lambda b: (0, 0)),
            pl.BlockSpec((HW, Cp), lambda b: (0, 0)),
            pl.BlockSpec((Cp, hid), lambda b: (0, 0)),
            pl.BlockSpec((hid, Cp), lambda b: (0, 0)),
        ],
        out_specs=(
            pl.BlockSpec((1, HW, Cp), lambda b: (b, 0, 0)),
            pl.BlockSpec((1, 1, Cp), lambda b: (b, 0, 0)),
        ),
        compiler_params=pltpu.CompilerParams(
            dimension_semantics=("parallel",),
            vmem_limit_bytes=_VMEM_LIMIT),
    )(y_pad, w2, s2.reshape(1, Cp), b2.reshape(1, Cp), filt_t, we1, we2)


# ---------------------------------------------------------------------------
# Kernel 3: ReLU(gate * pre) -> 1x1 conv + BN3 -> + residual -> ReLU
#   2D grid over (batch, spatial tiles); gate broadcast over spatial positions.
# ---------------------------------------------------------------------------
def _scale_residual_kernel(pre_ref, gate_ref, w3_ref, s3_ref, b3_ref, res_ref, o_ref):
    a = jnp.maximum(pre_ref[0].astype(jnp.float32) * gate_ref[0], 0.0)   # (thw, Cp)
    y = jnp.dot(a.astype(w3_ref.dtype), w3_ref[...],
                preferred_element_type=jnp.float32)
    y = y * s3_ref[...] + b3_ref[...] + res_ref[0]
    o_ref[0] = jnp.maximum(y, 0.0).astype(o_ref.dtype)


def scale_residual(pre, gate, w3, s3, b3, res):
    B, HW, Cp = pre.shape
    Cout = w3.shape[1]
    tile_hw = 512 if (HW > 512 and HW % 8 == 0) else HW
    grid = (B, pl.cdiv(HW, tile_hw))
    return pl.pallas_call(
        _scale_residual_kernel,
        out_shape=jax.ShapeDtypeStruct((B, HW, Cout), jnp.float32),
        grid=grid,
        in_specs=[
            pl.BlockSpec((1, tile_hw, Cp), lambda b, i: (b, i, 0)),
            pl.BlockSpec((1, 1, Cp), lambda b, i: (b, 0, 0)),
            pl.BlockSpec((Cp, Cout), lambda b, i: (0, 0)),
            pl.BlockSpec((1, Cout), lambda b, i: (0, 0)),
            pl.BlockSpec((1, Cout), lambda b, i: (0, 0)),
            pl.BlockSpec((1, tile_hw, Cout), lambda b, i: (b, i, 0)),
        ],
        out_specs=pl.BlockSpec((1, tile_hw, Cout), lambda b, i: (b, i, 0)),
        compiler_params=pltpu.CompilerParams(
            dimension_semantics=("parallel", "parallel"),
            vmem_limit_bytes=_VMEM_LIMIT),
    )(pre, gate, w3, s3.reshape(1, Cout), b3.reshape(1, Cout), res)


# ---------------------------------------------------------------------------
# Full Bottleneck forward (stride=1, downsample=None)
# ---------------------------------------------------------------------------
def bottleneck_forward(x_nchw, p):
    B, Cin, H, W = x_nchw.shape
    Cp = p["w1_mat"].shape[1]
    Cout = p["w3_mat"].shape[1]
    HW = H * W

    x_nhwc = jnp.transpose(x_nchw, (0, 2, 3, 1))                  # wrapper glue (NCHW i/o)
    x_flat = x_nhwc.reshape(B * HW, Cin).astype(jnp.bfloat16)

    # _preprocess: conv1x1 + BN1 + ReLU  (bf16 MXU inputs, f32 accumulate/epilogue)
    y1 = matmul_bn(x_flat, p["w1_mat"], p["s1"], p["b1"],
                   relu=True, out_dtype=jnp.bfloat16)

    # _preprocess conv3x3+BN2 fused with ortho attention + excitation -> (pre, gate)
    y1_pad = jnp.pad(y1.reshape(B, H, W, Cp), ((0, 0), (1, 1), (1, 1), (0, 0)))
    pre, gate = conv3x3_bn_ortho(y1_pad, p["w2_mat"], p["s2"], p["b2"],
                                 p["filt_t"], p["we1_mat"], p["we2_mat"], H=H, W=W)

    # _scale: ReLU(gate*pre) -> conv1x1 + BN3, residual add (f32) + ReLU
    residual = x_nhwc.reshape(B, HW, Cin)                          # Cin == 4*planes
    out = scale_residual(pre, gate, p["w3_mat"], p["s3"], p["b3"], residual)
    return jnp.transpose(out.reshape(B, H, W, Cout), (0, 3, 1, 2))


# ---------------------------------------------------------------------------
# Deterministic parameter construction
# ---------------------------------------------------------------------------
def make_ortho_filter(c, h, w, key):
    """Replicates gram_schmidt(initialize_orthogonal_filters) for c <= h*w."""
    assert c <= h * w
    v = np.asarray(jax.random.uniform(key, (c, h * w)), dtype=np.float64)
    out = []
    for i in range(c):
        x = v[i].copy()
        for y in out:
            x = x - (x @ y) / (y @ y) * y
        x = x / np.linalg.norm(x)
        out.append(x)
    return jnp.asarray(np.stack(out).reshape(c, h, w), dtype=jnp.float32)


def fold_bn(gamma, beta, mean, var, eps=1e-5):
    s = gamma / jnp.sqrt(var + eps)
    return s, beta - mean * s


def make_params(inplanes, planes, height, key):
    hidden = int(round(planes / 16))
    ks = jax.random.split(key, 16)
    w1 = jax.random.normal(ks[0], (planes, inplanes, 1, 1), jnp.float32) * 0.05
    w2 = jax.random.normal(ks[1], (planes, planes, 3, 3), jnp.float32) * 0.05
    w3 = jax.random.normal(ks[2], (4 * planes, planes, 1, 1), jnp.float32) * 0.05
    we1 = jax.random.normal(ks[3], (hidden, planes), jnp.float32) * 0.1   # torch (out,in)
    we2 = jax.random.normal(ks[4], (planes, hidden), jnp.float32) * 0.1

    def bn_params(k, c):
        k1, k2, k3, k4 = jax.random.split(k, 4)
        gamma = jax.random.uniform(k1, (c,), jnp.float32, 0.5, 1.5)
        beta = jax.random.uniform(k2, (c,), jnp.float32, -0.1, 0.1)
        mean = jax.random.uniform(k3, (c,), jnp.float32, -0.1, 0.1)
        var = jax.random.uniform(k4, (c,), jnp.float32, 0.5, 1.5)
        return fold_bn(gamma, beta, mean, var)

    s1, b1 = bn_params(ks[5], planes)
    s2, b2 = bn_params(ks[6], planes)
    s3, b3 = bn_params(ks[7], 4 * planes)

    filt = make_ortho_filter(planes, height, height, ks[8])   # (C, H, W) f32

    p = dict(
        # f32 originals (reference path)
        w1=w1, w2=w2, w3=w3, s1=s1, b1=b1, s2=s2, b2=b2, s3=s3, b3=b3, filt=filt,
        we1_mat=we1.T, we2_mat=we2.T,                                        # f32 (tiny)
        # bf16 MXU weights (kernel path), channels-last matmul layouts
        w1_mat=jnp.transpose(w1[:, :, 0, 0]).astype(jnp.bfloat16),           # (Cin, Cp)
        w2_mat=jnp.transpose(w2, (2, 3, 1, 0)).reshape(9 * planes, planes)
                   .astype(jnp.bfloat16),                                    # (9Cp, Cp)
        w3_mat=jnp.transpose(w3[:, :, 0, 0]).astype(jnp.bfloat16),           # (Cp, 4Cp)
        filt_t=filt.reshape(planes, height * height).T,                      # (HW, Cp) f32
    )
    return p


# ---------------------------------------------------------------------------
# Pure-JAX f32 reference (for verification only)
# ---------------------------------------------------------------------------
def ref_forward(x, p):
    dn = ("NCHW", "OIHW", "NCHW")

    def bn(y, s, b):
        return y * s[None, :, None, None] + b[None, :, None, None]

    y = lax.conv_general_dilated(x, p["w1"], (1, 1), "VALID", dimension_numbers=dn)
    y = jnp.maximum(bn(y, p["s1"], p["b1"]), 0.0)
    y = lax.conv_general_dilated(y, p["w2"], (1, 1), ((1, 1), (1, 1)),
                                 dimension_numbers=dn)
    pre = bn(y, p["s2"], p["b2"])
    comp = jnp.sum(p["filt"][None] * pre, axis=(2, 3))          # (B, C)
    h = jnp.maximum(comp @ p["we1_mat"], 0.0)
    gate = jax.nn.sigmoid(h @ p["we2_mat"])[:, :, None, None]
    z = jnp.maximum(gate * pre, 0.0)
    z = lax.conv_general_dilated(z, p["w3"], (1, 1), "VALID", dimension_numbers=dn)
    z = bn(z, p["s3"], p["b3"]) + x
    return jnp.maximum(z, 0.0)


if __name__ == "__main__":
    B, planes, H = 2, 32, 8
    inplanes = 4 * planes   # residual add requires inplanes == planes*expansion, stride=1

    key = jax.random.PRNGKey(0)
    k_params, k_x = jax.random.split(key)
    params = make_params(inplanes, planes, H, k_params)
    x = jax.random.normal(k_x, (B, inplanes, H, H), jnp.float32)

    out = jax.block_until_ready(bottleneck_forward(x, params))
    ref = jax.block_until_ready(ref_forward(x, params))

    # bf16 MXU inputs / intermediates vs f32 reference -> relaxed tolerance
    np.testing.assert_allclose(np.asarray(out), np.asarray(ref), rtol=2e-2, atol=2e-2)
    print("KERNEL_OK")
</pallas_src>

<mosaic_0001>
module attributes {stable_mosaic.version = 11 : i64} {
  func.func @_matmul_bn_kernel(%arg0: i32, %arg1: memref<128x128xbf16, #tpu.memory_space<vmem>>, %arg2: memref<128x32xbf16, #tpu.memory_space<vmem>>, %arg3: memref<1x32xf32, #tpu.memory_space<vmem>>, %arg4: memref<1x32xf32, #tpu.memory_space<vmem>>, %arg5: memref<128x32xbf16, #tpu.memory_space<vmem>>) attributes {dimension_semantics = [#tpu.dimension_semantics<parallel>], iteration_bounds = array<i64: 1>, scalar_prefetch = 0 : i64, scratch_operands = 0 : i64, tpu.core_type = #tpu.core_type<tc>, window_params = [{transform_indices = @transform_0, window_bounds = array<i64: 128, 128>}, {pipeline_mode = #tpu.pipeline_mode<synchronous>, transform_indices = @transform_1, window_bounds = array<i64: 128, 32>}, {pipeline_mode = #tpu.pipeline_mode<synchronous>, transform_indices = @transform_2, window_bounds = array<i64: 1, 32>}, {pipeline_mode = #tpu.pipeline_mode<synchronous>, transform_indices = @transform_3, window_bounds = array<i64: 1, 32>}, {transform_indices = @transform_4, window_bounds = array<i64: 128, 32>}]} {
    %c0 = arith.constant 0 : index
    %c0_0 = arith.constant 0 : index
    %0 = vector.load %arg1[%c0, %c0_0] : memref<128x128xbf16, #tpu.memory_space<vmem>>, vector<128x128xbf16>
    %c0_1 = arith.constant 0 : index
    %c0_2 = arith.constant 0 : index
    %1 = vector.load %arg2[%c0_1, %c0_2] : memref<128x32xbf16, #tpu.memory_space<vmem>>, vector<128x32xbf16>
    %cst = arith.constant dense<0.000000e+00> : vector<128x32xf32>
    %2 = tpu.matmul %0, %1, %cst {dimension_numbers = #tpu.dot_dimension_numbers<[1], [0], [0], [1], [0, 0, 1, 1], [], []>} : vector<128x128xbf16>, vector<128x32xbf16>, vector<128x32xf32> -> vector<128x32xf32>
    %c0_3 = arith.constant 0 : index
    %c0_4 = arith.constant 0 : index
    %3 = vector.load %arg3[%c0_3, %c0_4] : memref<1x32xf32, #tpu.memory_space<vmem>>, vector<1x32xf32>
    %4 = vector.broadcast %3 : vector<1x32xf32> to vector<128x32xf32>
    %5 = arith.mulf %2, %4 : vector<128x32xf32>
    %c0_5 = arith.constant 0 : index
    %c0_6 = arith.constant 0 : index
    %6 = vector.load %arg4[%c0_5, %c0_6] : memref<1x32xf32, #tpu.memory_space<vmem>>, vector<1x32xf32>
    %7 = vector.broadcast %6 : vector<1x32xf32> to vector<128x32xf32>
    %8 = arith.addf %5, %7 : vector<128x32xf32>
    %cst_7 = arith.constant 0.000000e+00 : f32
    %9 = vector.broadcast %cst_7 : f32 to vector<128x32xf32>
    %10 = arith.maximumf %8, %9 : vector<128x32xf32>
    %11 = arith.truncf %10 : vector<128x32xf32> to vector<128x32xbf16>
    %c0_8 = arith.constant 0 : index
    %c0_9 = arith.constant 0 : index
    %12 = vector.load %arg5[%c0_8, %c0_9] : memref<128x32xbf16, #tpu.memory_space<vmem>>, vector<128x32xbf16>
    tpu.vector_store %arg5[%c0_8, %c0_9], %11 {strides = array<i32>} : memref<128x32xbf16, #tpu.memory_space<vmem>>, vector<128x32xbf16>,
    return
  }
  func.func @transform_0(%arg0: i32) -> (i32, i32) {
    %c0_i32 = arith.constant 0 : i32
    %c0_i32_0 = arith.constant 0 : i32
    return %arg0, %c0_i32 : i32, i32
  }
  func.func @transform_1(%arg0: i32) -> (i32, i32) {
    %c0_i32 = arith.constant 0 : i32
    %c0_i32_0 = arith.constant 0 : i32
    %c0_i32_1 = arith.constant 0 : i32
    return %c0_i32, %c0_i32_0 : i32, i32
  }
  func.func @transform_2(%arg0: i32) -> (i32, i32) {
    %c0_i32 = arith.constant 0 : i32
    %c0_i32_0 = arith.constant 0 : i32
    %c0_i32_1 = arith.constant 0 : i32
    return %c0_i32, %c0_i32_0 : i32, i32
  }
  func.func @transform_3(%arg0: i32) -> (i32, i32) {
    %c0_i32 = arith.constant 0 : i32
    %c0_i32_0 = arith.constant 0 : i32
    %c0_i32_1 = arith.constant 0 : i32
    return %c0_i32, %c0_i32_0 : i32, i32
  }
  func.func @transform_4(%arg0: i32) -> (i32, i32) {
    %c0_i32 = arith.constant 0 : i32
    %c0_i32_0 = arith.constant 0 : i32
    return %arg0, %c0_i32 : i32, i32
  }
}

</mosaic_0001>

<llo_original>
// kernel: tpu_custom_call.1
$region0: #{tpu_custom_call.1}
  #allocation0 [shape = 'u32[]', space=smem, size = 0x4, offset = 0x4, fixed_abs, tag = 'smem constant byte address 0x4 - core index']
  #allocation1 [shape = 'u32[72,128]{1,0:T(1,128)}', space=vmem, size = 0x9000, scoped, tag = 'internal scratch']
  %s0 = inlined_call_operand.vmem [shape: bf16[128,128], index: 0, kind: input, shape index: {}]
  %s1 = inlined_call_operand.vmem [shape: bf16[128,32], index: 1, kind: input, shape index: {}]
  %s2 = inlined_call_operand.vmem [shape: f32[1,32], index: 2, kind: input, shape index: {}]
  %s3 = inlined_call_operand.vmem [shape: f32[1,32], index: 3, kind: input, shape index: {}]
  %s4 = inlined_call_operand.vmem [shape: bf16[128,32], index: 4, kind: output, shape index: {}]
  %s5 = sld [smem:[#allocation0]]
  $region26: #{tpu_custom_call.1} parent=0
    _
  %s7 = ssub.s32 1, %s5
  %s8 = scalar_select 0, %s7, %s5
  // Predicated region
  $region2: #{tpu_custom_call.1} parent=0 // pred_check
    _
  $region3: #{tpu_custom_call.1} parent=0 // pred_check_branch
    %10 = sbr.rel (0) target = $region5
  $region4: #{tpu_custom_call.1} parent=0 // pred_region
    _
  $region5: #{tpu_custom_call.1} parent=0 // pred_fallthru
    _
  // Predicated region
  $region6: #{tpu_custom_call.1} parent=0 // pred_check
    _
  $region7: #{tpu_custom_call.1} parent=0 // pred_check_branch
    %12 = sbr.rel (0) target = $region9
  $region8: #{tpu_custom_call.1} parent=0 // pred_region
    _
  $region9: #{tpu_custom_call.1} parent=0 // pred_fallthru
    _
  // Predicated region
  $region10: #{tpu_custom_call.1} parent=0 // pred_check
    _
  $region11: #{tpu_custom_call.1} parent=0 // pred_check_branch
    %14 = sbr.rel (0) target = $region13
  $region12: #{tpu_custom_call.1} parent=0 // pred_region
    _
  $region13: #{tpu_custom_call.1} parent=0 // pred_fallthru
    _
  // Predicated region
  $region14: #{tpu_custom_call.1} parent=0 // pred_check
    _
  $region15: #{tpu_custom_call.1} parent=0 // pred_check_branch
    %16 = sbr.rel (0) target = $region17
  $region16: #{tpu_custom_call.1} parent=0 // pred_region
    _
  $region17: #{tpu_custom_call.1} parent=0 // pred_fallthru
    _
  %v17 = vld [vmem:[%s0] sm:$0xf]
  %v18 = vld [vmem:[%s0 + $0x4] sm:$0xf]
  %v19 = vld [vmem:[%s0 + $0x8] sm:$0xf]
  %v20 = vld [vmem:[%s0 + $0xc] sm:$0xf]
  %v21 = vld [vmem:[%s0 + $0x10] sm:$0xf]
  %v22 = vld [vmem:[%s0 + $0x14] sm:$0xf]
  %v23 = vld [vmem:[%s0 + $0x18] sm:$0xf]
  %v24 = vld [vmem:[%s0 + $0x1c] sm:$0xf]
  %v25 = vld [vmem:[%s0 + $0x20] sm:$0xf]
  %v26 = vld [vmem:[%s0 + $0x24] sm:$0xf]
  %v27 = vld [vmem:[%s0 + $0x28] sm:$0xf]
  %v28 = vld [vmem:[%s0 + $0x2c] sm:$0xf]
  %v29 = vld [vmem:[%s0 + $0x30] sm:$0xf]
  %v30 = vld [vmem:[%s0 + $0x34] sm:$0xf]
  %v31 = vld [vmem:[%s0 + $0x38] sm:$0xf]
  %v32 = vld [vmem:[%s0 + $0x3c] sm:$0xf]
  %v33 = vld [vmem:[%s1] sm:$0xf]
  %v34 = vld [vmem:[%s1 + $0x4] sm:$0xf]
  %v35 = vld [vmem:[%s1 + $0x8] sm:$0xf]
  %v36 = vld [vmem:[%s1 + $0xc] sm:$0xf]
  %v37 = vld [vmem:[%s1 + $0x10] sm:$0xf]
  %v38 = vld [vmem:[%s1 + $0x14] sm:$0xf]
  %v39 = vld [vmem:[%s1 + $0x18] sm:$0xf]
  %v40 = vld [vmem:[%s1 + $0x1c] sm:$0xf]
  %v41 = vld [vmem:[%s1 + $0x20] sm:$0xf]
  %v42 = vld [vmem:[%s1 + $0x24] sm:$0xf]
  %v43 = vld [vmem:[%s1 + $0x28] sm:$0xf]
  %v44 = vld [vmem:[%s1 + $0x2c] sm:$0xf]
  %v45 = vld [vmem:[%s1 + $0x30] sm:$0xf]
  %v46 = vld [vmem:[%s1 + $0x34] sm:$0xf]
  %v47 = vld [vmem:[%s1 + $0x38] sm:$0xf]
  %v48 = vld [vmem:[%s1 + $0x3c] sm:$0xf]
  %v65 = vunpack.c.l.b16 %v17
  %v66 = vunpack.c.l.b16 %v18
  %v67 = vunpack.c.l.b16 %v19
  %v68 = vunpack.c.l.b16 %v20
  %v69 = vunpack.c.l.b16 %v21
  %v70 = vunpack.c.l.b16 %v22
  %v71 = vunpack.c.l.b16 %v23
  %v72 = vunpack.c.l.b16 %v24
  %v73 = vunpack.c.l.b16 %v25
  %v74 = vunpack.c.l.b16 %v26
  %v75 = vunpack.c.l.b16 %v27
  %v76 = vunpack.c.l.b16 %v28
  %v77 = vunpack.c.l.b16 %v29
  %v78 = vunpack.c.l.b16 %v30
  %v79 = vunpack.c.l.b16 %v31
  %v80 = vunpack.c.l.b16 %v32
  %v81 = vpack.c.b16 %v66, %v65
  %v82 = vpack.c.b16 %v68, %v67
  %v83 = vpack.c.b16 %v70, %v69
  %v84 = vpack.c.b16 %v72, %v71
  %v85 = vpack.c.b16 %v74, %v73
  %v86 = vpack.c.b16 %v76, %v75
  %v87 = vpack.c.b16 %v78, %v77
  %v88 = vpack.c.b16 %v80, %v79
  %v113 = vunpack.c.l.b16 %v33
  %v114 = vunpack.c.l.b16 %v34
  %v115 = vunpack.c.l.b16 %v35
  %v116 = vunpack.c.l.b16 %v36
  %v117 = vunpack.c.l.b16 %v37
  %v118 = vunpack.c.l.b16 %v38
  %v119 = vunpack.c.l.b16 %v39
  %v120 = vunpack.c.l.b16 %v40
  %v121 = vunpack.c.l.b16 %v41
  %v122 = vunpack.c.l.b16 %v42
  %v123 = vunpack.c.l.b16 %v43
  %v124 = vunpack.c.l.b16 %v44
  %v125 = vunpack.c.l.b16 %v45
  %v126 = vunpack.c.l.b16 %v46
  %v127 = vunpack.c.l.b16 %v47
  %v128 = vunpack.c.l.b16 %v48
  %v129 = vpack.c.b16 %v114, %v113
  %v130 = vpack.c.b16 %v116, %v115
  %v131 = vpack.c.b16 %v118, %v117
  %v132 = vpack.c.b16 %v120, %v119
  %v133 = vpack.c.b16 %v122, %v121
  %v134 = vpack.c.b16 %v124, %v123
  %v135 = vpack.c.b16 %v126, %v125
  %v136 = vpack.c.b16 %v128, %v127
  %145 = vmatpush.bf16.msra.mxu0 %v136
  %146 = vmatpush.bf16.msra.mxu0 %v135
  %147 = vmatpush.bf16.msra.mxu0 %v134
  %148 = vmatpush.bf16.msra.mxu0 %v133
  %149 = vmatpush.bf16.msra.mxu0 %v132
  %150 = vmatpush.bf16.msra.mxu0 %v131
  %151 = vmatpush.bf16.msra.mxu0 %v130
  %152 = vmatpush.bf16.msra.mxu0 %v129
  %153 = vmatmul.bf16.gmra.mxu0 %v81
  %v154 = vpop.f32.mrf.mxu0
  %v155 = vadd.f32 0.0, %v154
  %v156 = vpop.f32.mrf.mxu0
  %v157 = vadd.f32 0.0, %v156
  %158 = vmatmul.bf16.gmra.mxu0 %v82
  %v159 = vpop.f32.mrf.mxu0
  %v160 = vadd.f32 0.0, %v159
  %v161 = vpop.f32.mrf.mxu0
  %v162 = vadd.f32 0.0, %v161
  %163 = vmatmul.bf16.gmra.mxu0 %v83
  %v164 = vpop.f32.mrf.mxu0
  %v165 = vadd.f32 0.0, %v164
  %v166 = vpop.f32.mrf.mxu0
  %v167 = vadd.f32 0.0, %v166
  %168 = vmatmul.bf16.gmra.mxu0 %v84
  %v169 = vpop.f32.mrf.mxu0
  %v170 = vadd.f32 0.0, %v169
  %v171 = vpop.f32.mrf.mxu0
  %v172 = vadd.f32 0.0, %v171
  %173 = vmatmul.bf16.gmra.mxu0 %v85
  %v174 = vpop.f32.mrf.mxu0
  %v175 = vadd.f32 0.0, %v174
  %v176 = vpop.f32.mrf.mxu0
  %v177 = vadd.f32 0.0, %v176
  %178 = vmatmul.bf16.gmra.mxu0 %v86
  %v179 = vpop.f32.mrf.mxu0
  %v180 = vadd.f32 0.0, %v179
  %v181 = vpop.f32.mrf.mxu0
  %v182 = vadd.f32 0.0, %v181
  %183 = vmatmul.bf16.gmra.mxu0 %v87
  %v184 = vpop.f32.mrf.mxu0
  %v185 = vadd.f32 0.0, %v184
  %v186 = vpop.f32.mrf.mxu0
  %v187 = vadd.f32 0.0, %v186
  %188 = vmatmul.bf16.gmra.mxu0 %v88
  %v189 = vpop.f32.mrf.mxu0
  %v190 = vadd.f32 0.0, %v189
  %v191 = vpop.f32.mrf.mxu0
  %v192 = vadd.f32 0.0, %v191
  %193 = vdwg.mxu0
  %v194 = vld [vmem:[%s2] sm:$0x1]
  %v196 = vperm.slane %v194, 0
  %v198 = vmul.f32 %v155, %v196
  %v199 = vmul.f32 %v157, %v196
  %v200 = vmul.f32 %v160, %v196
  %v201 = vmul.f32 %v162, %v196
  %v202 = vmul.f32 %v165, %v196
  %v203 = vmul.f32 %v167, %v196
  %v204 = vmul.f32 %v170, %v196
  %v205 = vmul.f32 %v172, %v196
  %v206 = vmul.f32 %v175, %v196
  %v207 = vmul.f32 %v177, %v196
  %v208 = vmul.f32 %v180, %v196
  %v209 = vmul.f32 %v182, %v196
  %v210 = vmul.f32 %v185, %v196
  %v211 = vmul.f32 %v187, %v196
  %v212 = vmul.f32 %v190, %v196
  %v213 = vmul.f32 %v192, %v196
  %v214 = vld [vmem:[%s3] sm:$0x1]
  %v216 = vperm.slane %v214, 0
  %v218 = vadd.f32 %v198, %v216
  %v219 = vadd.f32 %v199, %v216
  %v220 = vadd.f32 %v200, %v216
  %v221 = vadd.f32 %v201, %v216
  %v222 = vadd.f32 %v202, %v216
  %v223 = vadd.f32 %v203, %v216
  %v224 = vadd.f32 %v204, %v216
  %v225 = vadd.f32 %v205, %v216
  %v226 = vadd.f32 %v206, %v216
  %v227 = vadd.f32 %v207, %v216
  %v228 = vadd.f32 %v208, %v216
  %v229 = vadd.f32 %v209, %v216
  %v230 = vadd.f32 %v210, %v216
  %v231 = vadd.f32 %v211, %v216
  %v232 = vadd.f32 %v212, %v216
  %v233 = vadd.f32 %v213, %v216
  %v234 = vmax.f32 %v218, 0.0
  %v235 = vmax.f32 %v219, 0.0
  %v236 = vmax.f32 %v220, 0.0
  %v237 = vmax.f32 %v221, 0.0
  %v238 = vmax.f32 %v222, 0.0
  %v239 = vmax.f32 %v223, 0.0
  %v240 = vmax.f32 %v224, 0.0
  %v241 = vmax.f32 %v225, 0.0
  %v242 = vmax.f32 %v226, 0.0
  %v243 = vmax.f32 %v227, 0.0
  %v244 = vmax.f32 %v228, 0.0
  %v245 = vmax.f32 %v229, 0.0
  %v246 = vmax.f32 %v230, 0.0
  %v247 = vmax.f32 %v231, 0.0
  %v248 = vmax.f32 %v232, 0.0
  %v249 = vmax.f32 %v233, 0.0
  %v250 = vpack.c.bf16 %v234, %v234
  %v251 = vpack.c.bf16 %v235, %v235
  %v252 = vpack.c.bf16 %v236, %v236
  %v253 = vpack.c.bf16 %v237, %v237
  %v254 = vpack.c.bf16 %v238, %v238
  %v255 = vpack.c.bf16 %v239, %v239
  %v256 = vpack.c.bf16 %v240, %v240
  %v257 = vpack.c.bf16 %v241, %v241
  %v258 = vpack.c.bf16 %v242, %v242
  %v259 = vpack.c.bf16 %v243, %v243
  %v260 = vpack.c.bf16 %v244, %v244
  %v261 = vpack.c.bf16 %v245, %v245
  %v262 = vpack.c.bf16 %v246, %v246
  %v263 = vpack.c.bf16 %v247, %v247
  %v264 = vpack.c.bf16 %v248, %v248
  %v265 = vpack.c.bf16 %v249, %v249
  %vm266 = vcmask 257024
  %267 = vst.msk [vmem:[%s4] sm:$0xf] %vm266, %v250
  %268 = vst.msk [vmem:[%s4 + $0x4] sm:$0xf] %vm266, %v251
  %269 = vst.msk [vmem:[%s4 + $0x8] sm:$0xf] %vm266, %v252
  %270 = vst.msk [vmem:[%s4 + $0xc] sm:$0xf] %vm266, %v253
  %271 = vst.msk [vmem:[%s4 + $0x10] sm:$0xf] %vm266, %v254
  %272 = vst.msk [vmem:[%s4 + $0x14] sm:$0xf] %vm266, %v255
  %273 = vst.msk [vmem:[%s4 + $0x18] sm:$0xf] %vm266, %v256
  %274 = vst.msk [vmem:[%s4 + $0x1c] sm:$0xf] %vm266, %v257
  %275 = vst.msk [vmem:[%s4 + $0x20] sm:$0xf] %vm266, %v258
  %276 = vst.msk [vmem:[%s4 + $0x24] sm:$0xf] %vm266, %v259
  %277 = vst.msk [vmem:[%s4 + $0x28] sm:$0xf] %vm266, %v260
  %278 = vst.msk [vmem:[%s4 + $0x2c] sm:$0xf] %vm266, %v261
  %279 = vst.msk [vmem:[%s4 + $0x30] sm:$0xf] %vm266, %v262
  %280 = vst.msk [vmem:[%s4 + $0x34] sm:$0xf] %vm266, %v263
  %281 = vst.msk [vmem:[%s4 + $0x38] sm:$0xf] %vm266, %v264
  %282 = vst.msk [vmem:[%s4 + $0x3c] sm:$0xf] %vm266, %v265
  // Predicated region
  $region18: #{tpu_custom_call.1} parent=0 // pred_check
    _
  $region19: #{tpu_custom_call.1} parent=0 // pred_check_branch
    %284 = sbr.rel (0) target = $region21
  $region20: #{tpu_custom_call.1} parent=0 // pred_region
    _
  $region21: #{tpu_custom_call.1} parent=0 // pred_fallthru
    _
  // Predicated region
  $region22: #{tpu_custom_call.1} parent=0 // pred_check
    _
  $region23: #{tpu_custom_call.1} parent=0 // pred_check_branch
    %286 = sbr.rel (0) target = $region25
  $region24: #{tpu_custom_call.1} parent=0 // pred_region
    _
  $region25: #{tpu_custom_call.1} parent=0 // pred_fallthru
    _

</llo_original>
